<compile_context>
chip_gen: v6e
topology: v6e:2x2x1
jax: 0.10.0
libtpu: 0.0.40
codegen_flags: <defaults>
</compile_context>

<pallas_src>
import jax
import jax.numpy as jnp
from jax.experimental import pallas as pl
from jax.experimental.pallas import tpu as pltpu


def rnn0_seq_kernel(
    cat_ref,    # (1, B, NC)   per-step block of category sequence
    x_ref,      # (1, B, IN)   per-step block of input sequence
    h0_ref,     # (B, H)       initial hidden (resident, constant block)
    w1c_ref,    # (NC, H+C)    fused [i2h | i2o] rows acting on category
    w1x_ref,    # (IN, H+C)    fused [i2h | i2o] rows acting on x
    w1h_ref,    # (H,  H+C)    fused [i2h | i2o] rows acting on hidden
    b1_ref,     # (1,  H+C)    fused [b_i2h | b_i2o]
    w2_ref,     # (H+C, C)     o2o weight
    b2_ref,     # (1,  C)      o2o bias
    out_ref,    # (1, B, C)    per-step log-softmax output block
    hid_ref,    # (B, H)       resident block: carries hidden across steps,
                #              holds the final hidden at the end of the grid
):
    t = pl.program_id(0)
    H = hid_ref.shape[-1]

    # First step: seed the resident hidden block from the initial hidden.
    @pl.when(t == 0)
    def _():
        hid_ref[...] = h0_ref[...]

    h = hid_ref[...]                                               # (B, H)

    # Stage 1: z1 = [i2h(combined) | i2o(combined)] without any concat:
    # three shared-output matmuls over the row-blocks of the fused weight.
    z1 = (
        jnp.dot(cat_ref[0], w1c_ref[...], preferred_element_type=jnp.float32)
        + jnp.dot(x_ref[0], w1x_ref[...], preferred_element_type=jnp.float32)
        + jnp.dot(h, w1h_ref[...], preferred_element_type=jnp.float32)
        + b1_ref[...]
    )                                                              # (B, H+C)

    h_new = z1[:, :H]                                              # (B, H)

    # Stage 2: o2o(cat(hidden_new, output)) == o2o(z1).
    z2 = (
        jnp.dot(z1, w2_ref[...], preferred_element_type=jnp.float32)
        + b2_ref[...]
    )                                                              # (B, C)

    # dropout (eval mode) == identity

    # log-softmax over dim=1
    m = jnp.max(z2, axis=1, keepdims=True)
    s = z2 - m
    lse = jnp.log(jnp.sum(jnp.exp(s), axis=1, keepdims=True))
    out_ref[0] = s - lse
    hid_ref[...] = h_new


def rnn0_sequence(category_seq, x_seq, hidden0, params):
    """Runs T recurrent steps inside one Pallas kernel.

    category_seq: (T, B, NC)   x_seq: (T, B, IN)   hidden0: (B, H)
    Returns (log_softmax outputs (T, B, C), final hidden (B, H)).
    """
    T, B, NC = category_seq.shape
    IN = x_seq.shape[-1]
    H = hidden0.shape[-1]
    C = params["w2"].shape[-1]

    const2 = lambda a: pl.BlockSpec(a.shape, lambda t: (0,) * a.ndim)

    weight_args = (
        params["w1_cat"], params["w1_x"], params["w1_hid"], params["b1"],
        params["w2"], params["b2"],
    )

    out, hid = pl.pallas_call(
        rnn0_seq_kernel,
        out_shape=(
            jax.ShapeDtypeStruct((T, B, C), jnp.float32),
            jax.ShapeDtypeStruct((B, H), jnp.float32),
        ),
        grid=(T,),
        in_specs=[
            pl.BlockSpec((1, B, NC), lambda t: (t, 0, 0)),   # category[t]
            pl.BlockSpec((1, B, IN), lambda t: (t, 0, 0)),   # x[t]
            pl.BlockSpec((B, H), lambda t: (0, 0)),          # initial hidden
        ] + [const2(a) for a in weight_args],                # weights: DMA once
        out_specs=(
            pl.BlockSpec((1, B, C), lambda t: (t, 0, 0)),    # per-step output
            pl.BlockSpec((B, H), lambda t: (0, 0)),          # resident hidden
        ),
        compiler_params=pltpu.CompilerParams(
            dimension_semantics=("arbitrary",),              # sequential time
        ),
    )(category_seq, x_seq, hidden0, *weight_args)
    return out, hid


def rnn0_forward(category, x, hidden, params):
    """Single-step forward matching RNN_0.forward exactly (T=1 kernel call)."""
    out, hid = rnn0_sequence(category[None], x[None], hidden, params)
    return out[0], hid


def init_params(key, input_size, hidden_size, n_categories):
    """PyTorch-style uniform(-1/sqrt(fan_in), 1/sqrt(fan_in)) init.

    Stage-1 weights are fused column-wise ([i2h | i2o]) and split row-wise
    into the (category, x, hidden) blocks so the kernel needs no concats.
    """
    num_classes = input_size
    D1 = n_categories + input_size + hidden_size
    D2 = hidden_size + num_classes

    ks = jax.random.split(key, 6)

    def u(k, shape, fan_in):
        bound = 1.0 / jnp.sqrt(jnp.float32(fan_in))
        return jax.random.uniform(k, shape, jnp.float32, -bound, bound)

    w_i2h = u(ks[0], (D1, hidden_size), D1)
    b_i2h = u(ks[1], (1, hidden_size), D1)
    w_i2o = u(ks[2], (D1, num_classes), D1)
    b_i2o = u(ks[3], (1, num_classes), D1)
    w_o2o = u(ks[4], (D2, num_classes), D2)
    b_o2o = u(ks[5], (1, num_classes), D2)

    w1 = jnp.concatenate([w_i2h, w_i2o], axis=1)        # (D1, H+C)
    b1 = jnp.concatenate([b_i2h, b_i2o], axis=1)        # (1,  H+C)

    nc, isz = n_categories, input_size
    return {
        "w1_cat": w1[:nc, :],
        "w1_x": w1[nc:nc + isz, :],
        "w1_hid": w1[nc + isz:, :],
        "b1": b1,
        "w2": w_o2o,
        "b2": b_o2o,
    }


def reference_step(category, x, hidden, params):
    """Pure-JAX mirror of the PyTorch module's forward (eval-mode dropout)."""
    combined = jnp.concatenate([category, x, hidden], axis=1)
    w1 = jnp.concatenate(
        [params["w1_cat"], params["w1_x"], params["w1_hid"]], axis=0)
    z1 = combined @ w1 + params["b1"]
    H = params["w1_hid"].shape[0]
    hidden_new = z1[:, :H]                      # i2h(combined)
    output = z1[:, H:]                          # i2o(combined)
    output_combined = jnp.concatenate([hidden_new, output], axis=1)
    z2 = output_combined @ params["w2"] + params["b2"]
    return jax.nn.log_softmax(z2, axis=1), hidden_new


if __name__ == "__main__":
    # Small shapes consistent with the module; B >= 8 to fill f32 sublanes.
    B, T = 8, 8
    input_size, hidden_size, n_categories = 16, 32, 8
    num_layers, dropout = 1, 0.1   # num_layers / dropout unused in eval path
    num_classes = input_size

    key = jax.random.PRNGKey(0)
    k_par, k_cat, k_x = jax.random.split(key, 3)

    params = init_params(k_par, input_size, hidden_size, n_categories)
    category_seq = jax.random.normal(k_cat, (T, B, n_categories), jnp.float32)
    x_seq = jax.random.normal(k_x, (T, B, input_size), jnp.float32)
    hidden0 = jnp.zeros((B, hidden_size), jnp.float32)   # initHidden-style

    # --- multi-step kernel (the optimized path) ------------------------------
    out_seq, h_final = rnn0_sequence(category_seq, x_seq, hidden0, params)
    jax.block_until_ready((out_seq, h_final))

    # pure-JAX reference recurrence
    h = hidden0
    ref_outs = []
    for t in range(T):
        o, h = reference_step(category_seq[t], x_seq[t], h, params)
        ref_outs.append(o)
    ref_out_seq = jnp.stack(ref_outs, axis=0)

    assert out_seq.shape == (T, B, num_classes)
    assert h_final.shape == (B, hidden_size)
    assert jnp.allclose(out_seq, ref_out_seq, atol=1e-4, rtol=1e-4)
    assert jnp.allclose(h_final, h, atol=1e-4, rtol=1e-4)

    # --- single-step call matching RNN_0.forward exactly ----------------------
    out1, hid1 = rnn0_forward(category_seq[0], x_seq[0], hidden0, params)
    jax.block_until_ready((out1, hid1))
    ref_o1, ref_h1 = reference_step(category_seq[0], x_seq[0], hidden0, params)
    assert jnp.allclose(out1, ref_o1, atol=1e-4, rtol=1e-4)
    assert jnp.allclose(hid1, ref_h1, atol=1e-4, rtol=1e-4)

    print("KERNEL_OK")
</pallas_src>

<mosaic_0001>
module attributes {stable_mosaic.version = 11 : i64} {
  func.func @rnn0_seq_kernel(%arg0: i32, %arg1: memref<1x8x8xf32, #tpu.memory_space<vmem>>, %arg2: memref<1x8x16xf32, #tpu.memory_space<vmem>>, %arg3: memref<8x32xf32, #tpu.memory_space<vmem>>, %arg4: memref<8x48xf32, #tpu.memory_space<vmem>>, %arg5: memref<16x48xf32, #tpu.memory_space<vmem>>, %arg6: memref<32x48xf32, #tpu.memory_space<vmem>>, %arg7: memref<1x48xf32, #tpu.memory_space<vmem>>, %arg8: memref<48x16xf32, #tpu.memory_space<vmem>>, %arg9: memref<1x16xf32, #tpu.memory_space<vmem>>, %arg10: memref<1x8x16xf32, #tpu.memory_space<vmem>>, %arg11: memref<8x32xf32, #tpu.memory_space<vmem>>) attributes {dimension_semantics = [#tpu.dimension_semantics<arbitrary>], iteration_bounds = array<i64: 8>, scalar_prefetch = 0 : i64, scratch_operands = 0 : i64, tpu.core_type = #tpu.core_type<tc>, window_params = [{transform_indices = @transform_0, window_bounds = array<i64: 1, 8, 8>}, {transform_indices = @transform_1, window_bounds = array<i64: 1, 8, 16>}, {pipeline_mode = #tpu.pipeline_mode<synchronous>, transform_indices = @transform_2, window_bounds = array<i64: 8, 32>}, {pipeline_mode = #tpu.pipeline_mode<synchronous>, transform_indices = @transform_3, window_bounds = array<i64: 8, 48>}, {pipeline_mode = #tpu.pipeline_mode<synchronous>, transform_indices = @transform_4, window_bounds = array<i64: 16, 48>}, {pipeline_mode = #tpu.pipeline_mode<synchronous>, transform_indices = @transform_5, window_bounds = array<i64: 32, 48>}, {pipeline_mode = #tpu.pipeline_mode<synchronous>, transform_indices = @transform_6, window_bounds = array<i64: 1, 48>}, {pipeline_mode = #tpu.pipeline_mode<synchronous>, transform_indices = @transform_7, window_bounds = array<i64: 48, 16>}, {pipeline_mode = #tpu.pipeline_mode<synchronous>, transform_indices = @transform_8, window_bounds = array<i64: 1, 16>}, {transform_indices = @transform_9, window_bounds = array<i64: 1, 8, 16>}, {pipeline_mode = #tpu.pipeline_mode<synchronous>, transform_indices = @transform_10, window_bounds = array<i64: 8, 32>}]} {
    %c0_i32 = arith.constant 0 : i32
    %0 = arith.cmpi eq, %arg0, %c0_i32 : i32
    %1 = arith.extui %0 : i1 to i32
    %c0_i32_0 = arith.constant 0 : i32
    %2 = arith.cmpi ne, %1, %c0_i32_0 : i32
    scf.if %2 {
      %c0_30 = arith.constant 0 : index
      %c0_31 = arith.constant 0 : index
      %39 = vector.load %arg3[%c0_30, %c0_31] : memref<8x32xf32, #tpu.memory_space<vmem>>, vector<8x32xf32>
      %c0_32 = arith.constant 0 : index
      %c0_33 = arith.constant 0 : index
      %40 = vector.load %arg11[%c0_32, %c0_33] : memref<8x32xf32, #tpu.memory_space<vmem>>, vector<8x32xf32>
      tpu.vector_store %arg11[%c0_32, %c0_33], %39 {strides = array<i32>} : memref<8x32xf32, #tpu.memory_space<vmem>>, vector<8x32xf32>,
    } else {
    }
    %c0 = arith.constant 0 : index
    %c0_1 = arith.constant 0 : index
    %3 = vector.load %arg11[%c0, %c0_1] : memref<8x32xf32, #tpu.memory_space<vmem>>, vector<8x32xf32>
    %c0_2 = arith.constant 0 : index
    %c0_3 = arith.constant 0 : index
    %c0_4 = arith.constant 0 : index
    %4 = vector.load %arg1[%c0_2, %c0_3, %c0_4] : memref<1x8x8xf32, #tpu.memory_space<vmem>>, vector<1x8x8xf32>
    %5 = vector.shape_cast %4 : vector<1x8x8xf32> to vector<8x8xf32>
    %c0_5 = arith.constant 0 : index
    %c0_6 = arith.constant 0 : index
    %6 = vector.load %arg4[%c0_5, %c0_6] : memref<8x48xf32, #tpu.memory_space<vmem>>, vector<8x48xf32>
    %cst = arith.constant dense<0.000000e+00> : vector<8x48xf32>
    %7 = tpu.matmul %5, %6, %cst {dimension_numbers = #tpu.dot_dimension_numbers<[1], [0], [0], [1], [0, 0, 1, 1], [], []>} : vector<8x8xf32>, vector<8x48xf32>, vector<8x48xf32> -> vector<8x48xf32>
    %c0_7 = arith.constant 0 : index
    %c0_8 = arith.constant 0 : index
    %c0_9 = arith.constant 0 : index
    %8 = vector.load %arg2[%c0_7, %c0_8, %c0_9] : memref<1x8x16xf32, #tpu.memory_space<vmem>>, vector<1x8x16xf32>
    %9 = vector.shape_cast %8 : vector<1x8x16xf32> to vector<8x16xf32>
    %c0_10 = arith.constant 0 : index
    %c0_11 = arith.constant 0 : index
    %10 = vector.load %arg5[%c0_10, %c0_11] : memref<16x48xf32, #tpu.memory_space<vmem>>, vector<16x48xf32>
    %cst_12 = arith.constant dense<0.000000e+00> : vector<8x48xf32>
    %11 = tpu.matmul %9, %10, %cst_12 {dimension_numbers = #tpu.dot_dimension_numbers<[1], [0], [0], [1], [0, 0, 1, 1], [], []>} : vector<8x16xf32>, vector<16x48xf32>, vector<8x48xf32> -> vector<8x48xf32>
    %12 = arith.addf %7, %11 : vector<8x48xf32>
    %c0_13 = arith.constant 0 : index
    %c0_14 = arith.constant 0 : index
    %13 = vector.load %arg6[%c0_13, %c0_14] : memref<32x48xf32, #tpu.memory_space<vmem>>, vector<32x48xf32>
    %cst_15 = arith.constant dense<0.000000e+00> : vector<8x48xf32>
    %14 = tpu.matmul %3, %13, %cst_15 {dimension_numbers = #tpu.dot_dimension_numbers<[1], [0], [0], [1], [0, 0, 1, 1], [], []>} : vector<8x32xf32>, vector<32x48xf32>, vector<8x48xf32> -> vector<8x48xf32>
    %15 = arith.addf %12, %14 : vector<8x48xf32>
    %c0_16 = arith.constant 0 : index
    %c0_17 = arith.constant 0 : index
    %16 = vector.load %arg7[%c0_16, %c0_17] : memref<1x48xf32, #tpu.memory_space<vmem>>, vector<1x48xf32>
    %17 = vector.broadcast %16 : vector<1x48xf32> to vector<8x48xf32>
    %18 = arith.addf %15, %17 : vector<8x48xf32>
    %19 = vector.extract_strided_slice %18 {offsets = [0, 0], sizes = [8, 32], strides = [1, 1]} : vector<8x48xf32> to vector<8x32xf32>
    %c0_18 = arith.constant 0 : index
    %c0_19 = arith.constant 0 : index
    %20 = vector.load %arg8[%c0_18, %c0_19] : memref<48x16xf32, #tpu.memory_space<vmem>>, vector<48x16xf32>
    %cst_20 = arith.constant dense<0.000000e+00> : vector<8x16xf32>
    %21 = tpu.matmul %18, %20, %cst_20 {dimension_numbers = #tpu.dot_dimension_numbers<[1], [0], [0], [1], [0, 0, 1, 1], [], []>} : vector<8x48xf32>, vector<48x16xf32>, vector<8x16xf32> -> vector<8x16xf32>
    %c0_21 = arith.constant 0 : index
    %c0_22 = arith.constant 0 : index
    %22 = vector.load %arg9[%c0_21, %c0_22] : memref<1x16xf32, #tpu.memory_space<vmem>>, vector<1x16xf32>
    %23 = vector.broadcast %22 : vector<1x16xf32> to vector<8x16xf32>
    %24 = arith.addf %21, %23 : vector<8x16xf32>
    %cst_23 = arith.constant dense<0xFF800000> : vector<8xf32>
    %25 = vector.multi_reduction <maximumf>, %24, %cst_23 [1] : vector<8x16xf32> to vector<8xf32>
    %26 = vector.shape_cast %25 : vector<8xf32> to vector<8x1xf32>
    %27 = vector.broadcast %26 : vector<8x1xf32> to vector<8x16xf32>
    %28 = arith.subf %24, %27 : vector<8x16xf32>
    %29 = math.exp %28 : vector<8x16xf32>
    %cst_24 = arith.constant dense<0.000000e+00> : vector<8xf32>
    %30 = vector.multi_reduction <add>, %29, %cst_24 [1] : vector<8x16xf32> to vector<8xf32>
    %31 = vector.shape_cast %30 : vector<8xf32> to vector<8x1xf32>
    %32 = math.log %31 : vector<8x1xf32>
    %33 = vector.broadcast %32 : vector<8x1xf32> to vector<8x16xf32>
    %34 = arith.subf %28, %33 : vector<8x16xf32>
    %c0_25 = arith.constant 0 : index
    %c0_26 = arith.constant 0 : index
    %c0_27 = arith.constant 0 : index
    %35 = vector.load %arg10[%c0_25, %c0_26, %c0_27] : memref<1x8x16xf32, #tpu.memory_space<vmem>>, vector<1x8x16xf32>
    %36 = vector.shape_cast %35 : vector<1x8x16xf32> to vector<8x16xf32>
    %37 = vector.shape_cast %34 : vector<8x16xf32> to vector<1x8x16xf32>
    tpu.vector_store %arg10[%c0_25, %c0_26, %c0_27], %37 {strides = array<i32>} : memref<1x8x16xf32, #tpu.memory_space<vmem>>, vector<1x8x16xf32>,
    %c0_28 = arith.constant 0 : index
    %c0_29 = arith.constant 0 : index
    %38 = vector.load %arg11[%c0_28, %c0_29] : memref<8x32xf32, #tpu.memory_space<vmem>>, vector<8x32xf32>
    tpu.vector_store %arg11[%c0_28, %c0_29], %19 {strides = array<i32>} : memref<8x32xf32, #tpu.memory_space<vmem>>, vector<8x32xf32>,
    return
  }
  func.func @transform_0(%arg0: i32) -> (i32, i32, i32) {
    %c0_i32 = arith.constant 0 : i32
    %c0_i32_0 = arith.constant 0 : i32
    %c0_i32_1 = arith.constant 0 : i32
    return %arg0, %c0_i32, %c0_i32_0 : i32, i32, i32
  }
  func.func @transform_1(%arg0: i32) -> (i32, i32, i32) {
    %c0_i32 = arith.constant 0 : i32
    %c0_i32_0 = arith.constant 0 : i32
    %c0_i32_1 = arith.constant 0 : i32
    return %arg0, %c0_i32, %c0_i32_0 : i32, i32, i32
  }
  func.func @transform_2(%arg0: i32) -> (i32, i32) {
    %c0_i32 = arith.constant 0 : i32
    %c0_i32_0 = arith.constant 0 : i32
    %c0_i32_1 = arith.constant 0 : i32
    return %c0_i32, %c0_i32_0 : i32, i32
  }
  func.func @transform_3(%arg0: i32) -> (i32, i32) {
    %c0_i32 = arith.constant 0 : i32
    %c0_i32_0 = arith.constant 0 : i32
    %c0_i32_1 = arith.constant 0 : i32
    return %c0_i32, %c0_i32_0 : i32, i32
  }
  func.func @transform_4(%arg0: i32) -> (i32, i32) {
    %c0_i32 = arith.constant 0 : i32
    %c0_i32_0 = arith.constant 0 : i32
    %c0_i32_1 = arith.constant 0 : i32
    return %c0_i32, %c0_i32_0 : i32, i32
  }
  func.func @transform_5(%arg0: i32) -> (i32, i32) {
    %c0_i32 = arith.constant 0 : i32
    %c0_i32_0 = arith.constant 0 : i32
    %c0_i32_1 = arith.constant 0 : i32
    return %c0_i32, %c0_i32_0 : i32, i32
  }
  func.func @transform_6(%arg0: i32) -> (i32, i32) {
    %c0_i32 = arith.constant 0 : i32
    %c0_i32_0 = arith.constant 0 : i32
    %c0_i32_1 = arith.constant 0 : i32
    return %c0_i32, %c0_i32_0 : i32, i32
  }
  func.func @transform_7(%arg0: i32) -> (i32, i32) {
    %c0_i32 = arith.constant 0 : i32
    %c0_i32_0 = arith.constant 0 : i32
    %c0_i32_1 = arith.constant 0 : i32
    return %c0_i32, %c0_i32_0 : i32, i32
  }
  func.func @transform_8(%arg0: i32) -> (i32, i32) {
    %c0_i32 = arith.constant 0 : i32
    %c0_i32_0 = arith.constant 0 : i32
    %c0_i32_1 = arith.constant 0 : i32
    return %c0_i32, %c0_i32_0 : i32, i32
  }
  func.func @transform_9(%arg0: i32) -> (i32, i32, i32) {
    %c0_i32 = arith.constant 0 : i32
    %c0_i32_0 = arith.constant 0 : i32
    %c0_i32_1 = arith.constant 0 : i32
    return %arg0, %c0_i32, %c0_i32_0 : i32, i32, i32
  }
  func.func @transform_10(%arg0: i32) -> (i32, i32) {
    %c0_i32 = arith.constant 0 : i32
    %c0_i32_0 = arith.constant 0 : i32
    %c0_i32_1 = arith.constant 0 : i32
    return %c0_i32, %c0_i32_0 : i32, i32
  }
}

</mosaic_0001>

<llo_original>
// kernel: tpu_custom_call.1
$region0: #{tpu_custom_call.1}
  #allocation0 [shape = 'u32[]', space=smem, size = 0x4, offset = 0x4, fixed_abs, tag = 'smem constant byte address 0x4 - core index']
  #allocation1 [shape = 'u32[144,128]{1,0:T(1,128)}', space=vmem, size = 0x12000, scoped, tag = 'internal scratch']
  %s0 = inlined_call_operand.vmem [shape: f32[8,8,8], index: 0, kind: input, shape index: {}]
  %s1 = inlined_call_operand.hbm [shape: f32[8,8,16], index: 1, kind: input, shape index: {}]
  %s2 = inlined_call_operand.hbm [shape: f32[8,32], index: 2, kind: input, shape index: {}]
  %s3 = inlined_call_operand.hbm [shape: f32[8,48], index: 3, kind: input, shape index: {}]
  %s4 = inlined_call_operand.hbm [shape: f32[16,48], index: 4, kind: input, shape index: {}]
  %s5 = inlined_call_operand.hbm [shape: f32[32,48], index: 5, kind: input, shape index: {}]
  %s6 = inlined_call_operand.vmem [shape: f32[1,48], index: 6, kind: input, shape index: {}]
  %s7 = inlined_call_operand.vmem [shape: f32[48,16], index: 7, kind: input, shape index: {}]
  %s8 = inlined_call_operand.vmem [shape: f32[1,16], index: 8, kind: input, shape index: {}]
  %s9 = inlined_call_operand.hbm [shape: f32[8,8,16], index: 9, kind: output, shape index: {0}]
  %s10 = inlined_call_operand.hbm [shape: f32[8,32], index: 10, kind: output, shape index: {1}]
  %11 = xla_tuple %s9, %s10
  %s12 = sld [smem:[#allocation0]]
  $region101: #{tpu_custom_call.1} parent=0
    _
  %s14 = ssub.s32 1, %s12
  %s15 = scalar_select 0, %s14, %s12
  $region1: #{tpu_custom_call.1} parent=0
    #allocation2 [shape = 'u8[8192]{0}', space=vmem, size = 0x2000, scoped, tag = 'input window, operand 1']
    #allocation3 [shape = 's32[2]{0}', space=sflag, size = 0x8, scoped, tag = 'scoped memory for tpu_custom_call.1']
    #allocation4 [shape = 's32[2]{0}', space=sflag, size = 0x8, scoped, tag = 'scoped memory for tpu_custom_call.1']
    #allocation5 [shape = 'u8[4096]{0}', space=vmem, size = 0x1000, scoped, tag = 'input window, operand 2, single buffered']
    #allocation6 [shape = 's32[1]{0}', space=sflag, size = 0x4, scoped, tag = 'scoped memory for tpu_custom_call.1']
    #allocation7 [shape = 'u8[4096]{0}', space=vmem, size = 0x1000, scoped, tag = 'input window, operand 3, single buffered']
    #allocation8 [shape = 'u8[8192]{0}', space=vmem, size = 0x2000, scoped, tag = 'input window, operand 4, single buffered']
    #allocation9 [shape = 's32[1]{0}', space=sflag, size = 0x4, scoped, tag = 'scoped memory for tpu_custom_call.1']
    #allocation10 [shape = 'u8[16384]{0}', space=vmem, size = 0x4000, scoped, tag = 'input window, operand 5, single buffered']
    #allocation11 [shape = 'u8[8192]{0}', space=vmem, size = 0x2000, scoped, tag = 'output window, operand 0']
    #allocation12 [shape = 'u8[4096]{0}', space=vmem, size = 0x1000, scoped, tag = 'output window, operand 1, single buffered']
    #allocation13 [shape = 's32[1]{0}', space=sflag, size = 0x4, scoped, tag = 'scoped memory for tpu_custom_call.1']
    %16 = vsyncpa [#allocation3], 0
    %s17 = scalar_lea.sflag [#allocation3], 1
    %18 = vsyncpa %s17, 0
    %19 = vsyncpa [#allocation6], 0
    %20 = vsyncpa [#allocation9], 0
    %21 = vsyncpa [#allocation4], 0
    %s22 = scalar_lea.sflag [#allocation4], 1
    %23 = vsyncpa %s22, 0
    %24 = vsyncpa [#allocation13], 0
    loop: start=0, step=1, limit=10
    $region2: #{tpu_custom_call.1} parent=1 // loop_pre_header
      _
    $region3: #{tpu_custom_call.1} parent=1 // loop_header
      %s26 = sphi 0, %s30
      %p27 = scmp.ge.s32.totalorder %s26, 10
      %s36 = sphi 0, %s38
      %s39 = sphi 0, %s36
      %s40 = sphi 0, %s39
      %s56 = sphi 0, %s40
      %s62 = sphi 0, %s64
      %s65 = sphi 0, %s62
      %s66 = sphi 0, %s65
      %s82 = sphi 0, %s66
      %s86 = sphi 0, %s86
      %s88 = sphi 0, %s86
      %s89 = sphi 0, %s88
      %s103 = sphi 0, %s89
      %s107 = sphi 0, %s107
      %s109 = sphi 0, %s107
      %s110 = sphi 0, %s109
      %s124 = sphi 0, %s110
      %s128 = sphi 0, %s128
      %s130 = sphi 0, %s128
      %s131 = sphi 0, %s130
      %s145 = sphi 0, %s131
      %s149 = sphi 0, %s149
      %s151 = sphi 0, %s149
      %s152 = sphi 0, %s151
      %s166 = sphi 0, %s152
      %s170 = sphi 0, %s170
      %s172 = sphi 0, %s170
      %s173 = sphi 0, %s172
      %s187 = sphi 0, %s173
      %s191 = sphi 0, %s191
      %s193 = sphi 0, %s191
      %s194 = sphi 0, %s193
      %s208 = sphi 0, %s194
      %s212 = sphi 0, %s212
      %s214 = sphi 0, %s212
      %s215 = sphi 0, %s214
      %s229 = sphi 0, %s215
      %s235 = sphi 0, %s237
      %s238 = sphi 0, %s235
      %s239 = sphi 0, %s238
      %s255 = sphi 0, %s239
      %s259 = sphi 0, %s259
      %s261 = sphi 0, %s259
      %s262 = sphi 0, %s261
      %s276 = sphi 0, %s262
    $region4: #{tpu_custom_call.1} parent=1 // loop_header_branch
      %29 = sbr.rel (%p27) target = $region8
    $region5: #{tpu_custom_call.1} parent=1 // loop_body
      %s31 = ssub.s32 %s26, 1
      %s32 = ssub.s32 %s26, 2
      %s33 = sadd.s32 %s26, 1
      %s34 = ssub.s32 %s26, %s33
      %p35 = scmp.eq.s32.totalorder %s34, 0
      %s37 = sadd.s32 %s36, 1
      %s38 = scalar_select %p35, %s36, %s37
      %p41 = pneg %p35
      %p42 = scmp.eq.s32.totalorder %s26, 7
      %p43 = por %p41, %p42
      %p44 = scmp.ne.s32.totalorder %s36, %s39
      %p45 = scmp.eq.s32.totalorder %s26, 0
      %p46 = por %p44, %p45
      %p47 = scmp.ne.s32.totalorder %s36, %s39
      %p48 = scmp.eq.s32.totalorder %s31, 7
      %p49 = por %p47, %p48
      %p50 = scmp.ne.s32.totalorder %s39, %s40
      %p51 = scmp.eq.s32.totalorder %s31, 0
      %p52 = por %p50, %p51
      %p53 = scmp.ne.s32.totalorder %s39, %s40
      %p54 = scmp.eq.s32.totalorder %s32, 7
      %p55 = por %p53, %p54
      %p57 = scmp.ne.s32.totalorder %s40, %s56
      %p58 = scmp.eq.s32.totalorder %s32, 0
      %p59 = por %p57, %p58
      %s60 = ssub.s32 %s26, %s33
      %p61 = scmp.eq.s32.totalorder %s60, 0
      %s63 = sadd.s32 %s62, 1
      %s64 = scalar_select %p61, %s62, %s63
      %p67 = pneg %p61
      %p68 = scmp.eq.s32.totalorder %s26, 7
      %p69 = por %p67, %p68
      %p70 = scmp.ne.s32.totalorder %s62, %s65
      %p71 = scmp.eq.s32.totalorder %s26, 0
      %p72 = por %p70, %p71
      %p73 = scmp.ne.s32.totalorder %s62, %s65
      %p74 = scmp.eq.s32.totalorder %s31, 7
      %p75 = por %p73, %p74
      %p76 = scmp.ne.s32.totalorder %s65, %s66
      %p77 = scmp.eq.s32.totalorder %s31, 0
      %p78 = por %p76, %p77
      %p79 = scmp.ne.s32.totalorder %s65, %s66
      %p80 = scmp.eq.s32.totalorder %s32, 7
      %p81 = por %p79, %p80
      %p83 = scmp.ne.s32.totalorder %s66, %s82
      %p84 = scmp.eq.s32.totalorder %s32, 0
      %p85 = por %p83, %p84
      %s87 = sadd.s32 %s86, 1
      %p90 = scmp.eq.s32.totalorder %s26, 7
      %p91 = scmp.ne.s32.totalorder %s86, %s88
      %p92 = scmp.eq.s32.totalorder %s26, 0
      %p93 = por %p91, %p92
      %p94 = scmp.ne.s32.totalorder %s86, %s88
      %p95 = scmp.eq.s32.totalorder %s31, 7
      %p96 = por %p94, %p95
      %p97 = scmp.ne.s32.totalorder %s88, %s89
      %p98 = scmp.eq.s32.totalorder %s31, 0
      %p99 = por %p97, %p98
      %p100 = scmp.ne.s32.totalorder %s88, %s89
      %p101 = scmp.eq.s32.totalorder %s32, 7
      %p102 = por %p100, %p101
      %p104 = scmp.ne.s32.totalorder %s89, %s103
      %p105 = scmp.eq.s32.totalorder %s32, 0
      %p106 = por %p104, %p105
      %s108 = sadd.s32 %s107, 1
      %p111 = scmp.eq.s32.totalorder %s26, 7
      %p112 = scmp.ne.s32.totalorder %s107, %s109
      %p113 = scmp.eq.s32.totalorder %s26, 0
      %p114 = por %p112, %p113
      %p115 = scmp.ne.s32.totalorder %s107, %s109
      %p116 = scmp.eq.s32.totalorder %s31, 7
      %p117 = por %p115, %p116
      %p118 = scmp.ne.s32.totalorder %s109, %s110
      %p119 = scmp.eq.s32.totalorder %s31, 0
      %p120 = por %p118, %p119
      %p121 = scmp.ne.s32.totalorder %s109, %s110
      %p122 = scmp.eq.s32.totalorder %s32, 7
      %p123 = por %p121, %p122
      %p125 = scmp.ne.s32.totalorder %s110, %s124
      %p126 = scmp.eq.s32.totalorder %s32, 0
      %p127 = por %p125, %p126
      %s129 = sadd.s32 %s128, 1
      %p132 = scmp.eq.s32.totalorder %s26, 7
      %p133 = scmp.ne.s32.totalorder %s128, %s130
      %p134 = scmp.eq.s32.totalorder %s26, 0
      %p135 = por %p133, %p134
      %p136 = scmp.ne.s32.totalorder %s128, %s130
      %p137 = scmp.eq.s32.totalorder %s31, 7
      %p138 = por %p136, %p137
      %p139 = scmp.ne.s32.totalorder %s130, %s131
      %p140 = scmp.eq.s32.totalorder %s31, 0
      %p141 = por %p139, %p140
      %p142 = scmp.ne.s32.totalorder %s130, %s131
      %p143 = scmp.eq.s32.totalorder %s32, 7
      %p144 = por %p142, %p143
      %p146 = scmp.ne.s32.totalorder %s131, %s145
      %p147 = scmp.eq.s32.totalorder %s32, 0
      %p148 = por %p146, %p147
      %s150 = sadd.s32 %s149, 1
      %p153 = scmp.eq.s32.totalorder %s26, 7
      %p154 = scmp.ne.s32.totalorder %s149, %s151
      %p155 = scmp.eq.s32.totalorder %s26, 0
      %p156 = por %p154, %p155
      %p157 = scmp.ne.s32.totalorder %s149, %s151
      %p158 = scmp.eq.s32.totalorder %s31, 7
      %p159 = por %p157, %p158
      %p160 = scmp.ne.s32.totalorder %s151, %s152
      %p161 = scmp.eq.s32.totalorder %s31, 0
      %p162 = por %p160, %p161
      %p163 = scmp.ne.s32.totalorder %s151, %s152
      %p164 = scmp.eq.s32.totalorder %s32, 7
      %p165 = por %p163, %p164
      %p167 = scmp.ne.s32.totalorder %s152, %s166
      %p168 = scmp.eq.s32.totalorder %s32, 0
      %p169 = por %p167, %p168
      %s171 = sadd.s32 %s170, 1
      %p174 = scmp.eq.s32.totalorder %s26, 7
      %p175 = scmp.ne.s32.totalorder %s170, %s172
      %p176 = scmp.eq.s32.totalorder %s26, 0
      %p177 = por %p175, %p176
      %p178 = scmp.ne.s32.totalorder %s170, %s172
      %p179 = scmp.eq.s32.totalorder %s31, 7
      %p180 = por %p178, %p179
      %p181 = scmp.ne.s32.totalorder %s172, %s173
      %p182 = scmp.eq.s32.totalorder %s31, 0
      %p183 = por %p181, %p182
      %p184 = scmp.ne.s32.totalorder %s172, %s173
      %p185 = scmp.eq.s32.totalorder %s32, 7
      %p186 = por %p184, %p185
      %p188 = scmp.ne.s32.totalorder %s173, %s187
      %p189 = scmp.eq.s32.totalorder %s32, 0
      %p190 = por %p188, %p189
      %s192 = sadd.s32 %s191, 1
      %p195 = scmp.eq.s32.totalorder %s26, 7
      %p196 = scmp.ne.s32.totalorder %s191, %s193
      %p197 = scmp.eq.s32.totalorder %s26, 0
      %p198 = por %p196, %p197
      %p199 = scmp.ne.s32.totalorder %s191, %s193
      %p200 = scmp.eq.s32.totalorder %s31, 7
      %p201 = por %p199, %p200
      %p202 = scmp.ne.s32.totalorder %s193, %s194
      %p203 = scmp.eq.s32.totalorder %s31, 0
      %p204 = por %p202, %p203
      %p205 = scmp.ne.s32.totalorder %s193, %s194
      %p206 = scmp.eq.s32.totalorder %s32, 7
      %p207 = por %p205, %p206
      %p209 = scmp.ne.s32.totalorder %s194, %s208
      %p210 = scmp.eq.s32.totalorder %s32, 0
      %p211 = por %p209, %p210
      %s213 = sadd.s32 %s212, 1
      %p216 = scmp.eq.s32.totalorder %s26, 7
      %p217 = scmp.ne.s32.totalorder %s212, %s214
      %p218 = scmp.eq.s32.totalorder %s26, 0
      %p219 = por %p217, %p218
      %p220 = scmp.ne.s32.totalorder %s212, %s214
      %p221 = scmp.eq.s32.totalorder %s31, 7
      %p222 = por %p220, %p221
      %p223 = scmp.ne.s32.totalorder %s214, %s215
      %p224 = scmp.eq.s32.totalorder %s31, 0
      %p225 = por %p223, %p224
      %p226 = scmp.ne.s32.totalorder %s214, %s215
      %p227 = scmp.eq.s32.totalorder %s32, 7
      %p228 = por %p226, %p227
      %p230 = scmp.ne.s32.totalorder %s215, %s229
      %p231 = scmp.eq.s32.totalorder %s32, 0
      %p232 = por %p230, %p231
      %s233 = ssub.s32 %s26, %s33
      %p234 = scmp.eq.s32.totalorder %s233, 0
      %s236 = sadd.s32 %s235, 1
      %s237 = scalar_select %p234, %s235, %s236
      %p240 = pneg %p234
      %p241 = scmp.eq.s32.totalorder %s26, 7
      %p242 = por %p240, %p241
      %p243 = scmp.ne.s32.totalorder %s235, %s238
      %p244 = scmp.eq.s32.totalorder %s26, 0
      %p245 = por %p243, %p244
      %p246 = scmp.ne.s32.totalorder %s235, %s238
      %p247 = scmp.eq.s32.totalorder %s31, 7
      %p248 = por %p246, %p247
      %p249 = scmp.ne.s32.totalorder %s238, %s239
      %p250 = scmp.eq.s32.totalorder %s31, 0
      %p251 = por %p249, %p250
      %p252 = scmp.ne.s32.totalorder %s238, %s239
      %p253 = scmp.eq.s32.totalorder %s32, 7
      %p254 = por %p252, %p253
      %p256 = scmp.ne.s32.totalorder %s239, %s255
      %p257 = scmp.eq.s32.totalorder %s32, 0
      %p258 = por %p256, %p257
      %s260 = sadd.s32 %s259, 1
      %p263 = scmp.eq.s32.totalorder %s26, 7
      %p264 = scmp.ne.s32.totalorder %s259, %s261
      %p265 = scmp.eq.s32.totalorder %s26, 0
      %p266 = por %p264, %p265
      %p267 = scmp.ne.s32.totalorder %s259, %s261
      %p268 = scmp.eq.s32.totalorder %s31, 7
      %p269 = por %p267, %p268
      %p270 = scmp.ne.s32.totalorder %s261, %s262
      %p271 = scmp.eq.s32.totalorder %s31, 0
      %p272 = por %p270, %p271
      %p273 = scmp.ne.s32.totalorder %s261, %s262
      %p274 = scmp.eq.s32.totalorder %s32, 7
      %p275 = por %p273, %p274
      %p277 = scmp.ne.s32.totalorder %s262, %s276
      %p278 = scmp.eq.s32.totalorder %s32, 0
      %p279 = por %p277, %p278
      %p280 = scmp.le.s32.totalorder 1, %s26
      %p281 = scmp.lt.s32.totalorder %s26, 9
      %p282 = pnand %p280, %p281
      %p283 = pneg %p282
      // Predicated region
      $region9: #{tpu_custom_call.1} parent=5 // pred_check
        _
      $region10: #{tpu_custom_call.1} parent=5 // pred_check_branch
        %285 = sbr.rel (%p282) target = $region12
      $region11: #{tpu_custom_call.1} parent=5 // pred_region
        %s286 = ssub.s32 %s26, 1
        // Predicated region
        $region13: #{tpu_custom_call.1} parent=11 // pred_check
          %p287 = pneg %p99
        $region14: #{tpu_custom_call.1} parent=11 // pred_check_branch
          %289 = sbr.rel (%p287) target = $region16
        $region15: #{tpu_custom_call.1} parent=11 // pred_region
          %s291 = ssub.s32 128, 128
          %292 = vsyncadd [#allocation6], %s291
          %s294 = sshll.u32 [#allocation5], 4
          %s295 = int_to_ptr.vmem [resolvable:$true] %s294
          %297 = dma.hbm_to_vmem [thread:$0]  %s2, 128, %s295, [#allocation6]
        $region16: #{tpu_custom_call.1} parent=11 // pred_fallthru
          _
        // Predicated region
        $region17: #{tpu_custom_call.1} parent=11 // pred_check
          %p298 = pneg %p120
        $region18: #{tpu_custom_call.1} parent=11 // pred_check_branch
          %300 = sbr.rel (%p298) target = $region20
        $region19: #{tpu_custom_call.1} parent=11 // pred_region
          %s302 = ssub.s32 128, 128
          %303 = vsyncadd [#allocation6], %s302
          %s305 = sshll.u32 [#allocation7], 4
          %s306 = int_to_ptr.vmem [resolvable:$true] %s305
          %308 = dma.hbm_to_vmem [thread:$0]  %s3, 128, %s306, [#allocation6]
        $region20: #{tpu_custom_call.1} parent=11 // pred_fallthru
          _
        // Predicated region
        $region21: #{tpu_custom_call.1} parent=11 // pred_check
          %p309 = pneg %p141
        $region22: #{tpu_custom_call.1} parent=11 // pred_check_branch
          %311 = sbr.rel (%p309) target = $region24
        $region23: #{tpu_custom_call.1} parent=11 // pred_region
          %s313 = ssub.s32 256, 256
          %314 = vsyncadd [#allocation9], %s313
          %s315 = sshll.u32 [#allocation8], 4
          %s316 = int_to_ptr.vmem [resolvable:$true] %s315
          %321 = dma.hbm_to_vmem [thread:$0]  %s4, 256, %s316, [#allocation9], 128, 128, 8
        $region24: #{tpu_custom_call.1} parent=11 // pred_fallthru
          _
        // Predicated region
        $region25: #{tpu_custom_call.1} parent=11 // pred_check
          %p322 = pneg %p162
        $region26: #{tpu_custom_call.1} parent=11 // pred_check_branch
          %324 = sbr.rel (%p322) target = $region28
        $region27: #{tpu_custom_call.1} parent=11 // pred_region
          %s326 = ssub.s32 512, 512
          %327 = vsyncadd [#allocation9], %s326
          %s328 = sshll.u32 [#allocation10], 4
          %s329 = int_to_ptr.vmem [resolvable:$true] %s328
          %334 = dma.hbm_to_vmem [thread:$0]  %s5, 512, %s329, [#allocation9], 128, 128, 8
        $region28: #{tpu_custom_call.1} parent=11 // pred_fallthru
          _
        // Predicated region
        $region29: #{tpu_custom_call.1} parent=11 // pred_check
          %p335 = pneg %p183
        $region30: #{tpu_custom_call.1} parent=11 // pred_check_branch
          %337 = sbr.rel (%p335) target = $region32
        $region31: #{tpu_custom_call.1} parent=11 // pred_region
          _
        $region32: #{tpu_custom_call.1} parent=11 // pred_fallthru
          _
        // Predicated region
        $region33: #{tpu_custom_call.1} parent=11 // pred_check
          %p338 = pneg %p204
        $region34: #{tpu_custom_call.1} parent=11 // pred_check_branch
          %340 = sbr.rel (%p338) target = $region36
        $region35: #{tpu_custom_call.1} parent=11 // pred_region
          _
        $region36: #{tpu_custom_call.1} parent=11 // pred_fallthru
          _
        // Predicated region
        $region37: #{tpu_custom_call.1} parent=11 // pred_check
          %p341 = pneg %p225
        $region38: #{tpu_custom_call.1} parent=11 // pred_check_branch
          %343 = sbr.rel (%p341) target = $region40
        $region39: #{tpu_custom_call.1} parent=11 // pred_region
          _
        $region40: #{tpu_custom_call.1} parent=11 // pred_fallthru
          _
      $region12: #{tpu_custom_call.1} parent=5 // pred_fallthru
        _
      %p344 = scmp.lt.s32.totalorder %s26, 8
      // Predicated region
      $region41: #{tpu_custom_call.1} parent=5 // pred_check
        %p345 = pneg %p344
      $region42: #{tpu_custom_call.1} parent=5 // pred_check_branch
        %347 = sbr.rel (%p345) target = $region44
      $region43: #{tpu_custom_call.1} parent=5 // pred_region
        // Predicated region
        $region45: #{tpu_custom_call.1} parent=43 // pred_check
          %p348 = pneg %p46
        $region46: #{tpu_custom_call.1} parent=43 // pred_check_branch
          %350 = sbr.rel (%p348) target = $region48
        $region47: #{tpu_custom_call.1} parent=43 // pred_region
          %p351 = scmp.lt.s32.totalorder %s26, 7
          %s352 = scalar_select %p351, %s26, 7
          %s353 = smul.addr %s352, 8
          %s354 = scalar_lea.vmem %s0, %s353
        $region48: #{tpu_custom_call.1} parent=43 // pred_fallthru
          _
        // Predicated region
        $region49: #{tpu_custom_call.1} parent=43 // pred_check
          %p355 = pneg %p72
        $region50: #{tpu_custom_call.1} parent=43 // pred_check_branch
          %357 = sbr.rel (%p355) target = $region52
        $region51: #{tpu_custom_call.1} parent=43 // pred_region
          %s358 = sand.u32 %s62, 1
          %s359 = scalar_lea.sflag [#allocation3], %s358
          %s360 = sand.u32 %s62, 1
          %s361 = smul.addr %s360, 8
          %s362 = scalar_lea.vmem [#allocation2], %s361
          %s364 = ssub.s32 128, 128
          %365 = vsyncadd %s359, %s364
          %s366 = smul.addr %s26, 128
          %s367 = scalar_lea.hbm %s1, %s366
          %s369 = sshll.u32 %s362, 4
          %s370 = int_to_ptr.vmem [resolvable:$true] %s369
          %372 = dma.hbm_to_vmem [thread:$0]  %s367, 128, %s370, %s359
        $region52: #{tpu_custom_call.1} parent=43 // pred_fallthru
          _
      $region44: #{tpu_custom_call.1} parent=5 // pred_fallthru
        _
      %p373 = scmp.le.s32.totalorder 1, %s26
      %p374 = scmp.lt.s32.totalorder %s26, 9
      %p375 = pnand %p373, %p374
      %p376 = pneg %p375
      // Predicated region
      $region53: #{tpu_custom_call.1} parent=5 // pred_check
        _
      $region54: #{tpu_custom_call.1} parent=5 // pred_check_branch
        %378 = sbr.rel (%p375) target = $region56
      $region55: #{tpu_custom_call.1} parent=5 // pred_region
        %s379 = ssub.s32 %s26, 1
        %s380 = sand.u32 %s65, 1
        %s381 = scalar_lea.sflag [#allocation3], %s380
        %s382 = sand.u32 %s65, 1
        %s383 = smul.addr %s382, 8
        %s384 = scalar_lea.vmem [#allocation2], %s383
        // Predicated region
        $region57: #{tpu_custom_call.1} parent=55 // pred_check
          %p385 = pneg %p78
        $region58: #{tpu_custom_call.1} parent=55 // pred_check_branch
          %387 = sbr.rel (%p385) target = $region60
        $region59: #{tpu_custom_call.1} parent=55 // pred_region
          %388 = dma.done %s381, 128
        $region60: #{tpu_custom_call.1} parent=55 // pred_fallthru
          _
        // Predicated region
        $region61: #{tpu_custom_call.1} parent=55 // pred_check
          %p389 = pneg %p99
        $region62: #{tpu_custom_call.1} parent=55 // pred_check_branch
          %391 = sbr.rel (%p389) target = $region64
        $region63: #{tpu_custom_call.1} parent=55 // pred_region
          %392 = dma.done [#allocation6], 128
        $region64: #{tpu_custom_call.1} parent=55 // pred_fallthru
          _
        // Predicated region
        $region65: #{tpu_custom_call.1} parent=55 // pred_check
          %p393 = pneg %p120
        $region66: #{tpu_custom_call.1} parent=55 // pred_check_branch
          %395 = sbr.rel (%p393) target = $region68
        $region67: #{tpu_custom_call.1} parent=55 // pred_region
          %396 = dma.done [#allocation6], 128
        $region68: #{tpu_custom_call.1} parent=55 // pred_fallthru
          _
        // Predicated region
        $region69: #{tpu_custom_call.1} parent=55 // pred_check
          %p397 = pneg %p141
        $region70: #{tpu_custom_call.1} parent=55 // pred_check_branch
          %399 = sbr.rel (%p397) target = $region72
        $region71: #{tpu_custom_call.1} parent=55 // pred_region
          %400 = dma.done [#allocation9], 256
        $region72: #{tpu_custom_call.1} parent=55 // pred_fallthru
          _
        // Predicated region
        $region73: #{tpu_custom_call.1} parent=55 // pred_check
          %p401 = pneg %p162
        $region74: #{tpu_custom_call.1} parent=55 // pred_check_branch
          %403 = sbr.rel (%p401) target = $region76
        $region75: #{tpu_custom_call.1} parent=55 // pred_region
          %404 = dma.done [#allocation9], 512
        $region76: #{tpu_custom_call.1} parent=55 // pred_fallthru
          _
        %p405 = scmp.lt.s32.totalorder %s31, 7
        %s406 = scalar_select %p405, %s31, 7
        %s407 = smul.addr %s406, 8
        %s408 = scalar_lea.vmem %s0, %s407
        %p409 = pneg %p52
        %p410 = pneg %p49
        %s411 = sand.u32 %s65, 1
        %s412 = scalar_lea.sflag [#allocation3], %s411
        %s413 = sand.u32 %s65, 1
        %s414 = smul.addr %s413, 8
        %s415 = scalar_lea.vmem [#allocation2], %s414
        %p416 = pneg %p78
        %p417 = pneg %p75
        %p418 = pneg %p99
        %p419 = pneg %p96
        %p420 = pneg %p120
        %p421 = pneg %p117
        %p422 = pneg %p141
        %p423 = pneg %p138
        %p424 = pneg %p162
        %p425 = pneg %p159
        %p426 = pneg %p183
        %p427 = pneg %p180
        %p428 = pneg %p204
        %p429 = pneg %p201
        %p430 = pneg %p225
        %p431 = pneg %p222
        %p432 = pneg %p251
        %p433 = pneg %p248
        %s434 = sand.u32 %s238, 1
        %s435 = scalar_lea.sflag [#allocation4], %s434
        %s436 = sand.u32 %s238, 1
        %s437 = smul.addr %s436, 8
        %s438 = scalar_lea.vmem [#allocation11], %s437
        %p439 = pneg %p272
        %p440 = pneg %p269
        %p441 = scmp.lt.s32.totalorder %s31, 7
        %s442 = scalar_select %p441, %s31, 7
        %s443 = smul.addr %s442, 8
        %s444 = scalar_lea.vmem %s0, %s443
        %p445 = scmp.eq.s32.totalorder %s31, 0
        // Predicated region
        $region77: #{tpu_custom_call.1} parent=55 // pred_check
          %p446 = pneg %p445
        $region78: #{tpu_custom_call.1} parent=55 // pred_check_branch
          %448 = sbr.rel (%p446) target = $region80
        $region79: #{tpu_custom_call.1} parent=55 // pred_region
          %v449 = vld [vmem:[#allocation5] sm:$0xff]
          %vm450 = vcmask 261120
          %451 = vst.msk [vmem:[#allocation12] sm:$0xff] %vm450, %v449
        $region80: #{tpu_custom_call.1} parent=55 // pred_fallthru
          _
        %v452 = vld [vmem:[#allocation12] sm:$0xff]
        %v453 = vld [vmem:[%s444] sm:$0xff]
        %v454 = vld [vmem:[#allocation7] sm:$0xff]
        %v455 = vld [vmem:[%s384] sm:$0xff]
        %v456 = vld [vmem:[#allocation8] sm:$0xff]
        %v457 = vld [vmem:[#allocation8 + $0x8] sm:$0xff]
        %vm458 = vcmask 130048
        %v460 = vsel %vm458, %v455, 0
        %462 = vmatprep.subr.mxu0 0.0
        %463 = vmatpush1.msra.mxu0 0.0
        %464 = vmatprep.subr.mxu0 0.0
        %465 = vmatpush1.msra.mxu0 0.0
        %466 = vmatprep.subr.mxu0 0.0
        %467 = vmatpush1.msra.mxu0 0.0
        %468 = vmatprep.subr.mxu0 0.0
        %469 = vmatpush1.msra.mxu0 0.0
        %470 = vmatprep.subr.mxu0 0.0
        %471 = vmatpush1.msra.mxu0 0.0
        %472 = vmatprep.subr.mxu0 0.0
        %473 = vmatpush1.msra.mxu0 0.0
        %474 = vmatprep.subr.mxu0 0.0
        %475 = vmatpush1.msra.mxu0 0.0
        %476 = vmatprep.subr.mxu0 0.0
        %477 = vmatpush1.msra.mxu0 0.0
        %478 = vmatprep.subr.mxu0 0.0
        %479 = vmatpush1.msra.mxu0 0.0
        %480 = vmatprep.subr.mxu0 0.0
        %481 = vmatpush1.msra.mxu0 0.0
        %482 = vmatprep.subr.mxu0 0.0
        %483 = vmatpush1.msra.mxu0 0.0
        %484 = vmatprep.subr.mxu0 0.0
        %485 = vmatpush1.msra.mxu0 0.0
        %486 = vmatprep.subr.mxu0 0.0
        %487 = vmatpush1.msra.mxu0 0.0
        %488 = vmatprep.subr.mxu0 0.0
        %489 = vmatpush1.msra.mxu0 0.0
        %490 = vmatprep.subr.mxu0 0.0
        %491 = vmatpush1.msra.mxu0 %v457
        %492 = vmatprep.subr.mxu0 0.0
        %493 = vmatpush1.msra.mxu0 %v456
        %494 = vmatprep.subr.mxu0 0.0
        %495 = vmatpush2.msra.mxu0 0.0
        %496 = vmatprep.subr.mxu0 0.0
        %497 = vmatpush2.msra.mxu0 0.0
        %498 = vmatprep.subr.mxu0 0.0
        %499 = vmatpush2.msra.mxu0 0.0
        %500 = vmatprep.subr.mxu0 0.0
        %501 = vmatpush2.msra.mxu0 0.0
        %502 = vmatprep.subr.mxu0 0.0
        %503 = vmatpush2.msra.mxu0 0.0
        %504 = vmatprep.subr.mxu0 0.0
        %505 = vmatpush2.msra.mxu0 0.0
        %506 = vmatprep.subr.mxu0 0.0
        %507 = vmatpush2.msra.mxu0 0.0
        %508 = vmatprep.subr.mxu0 0.0
        %509 = vmatpush2.msra.mxu0 0.0
        %510 = vmatprep.subr.mxu0 0.0
        %511 = vmatpush2.msra.mxu0 0.0
        %512 = vmatprep.subr.mxu0 0.0
        %513 = vmatpush2.msra.mxu0 0.0
        %514 = vmatprep.subr.mxu0 0.0
        %515 = vmatpush2.msra.mxu0 0.0
        %516 = vmatprep.subr.mxu0 0.0
        %517 = vmatpush2.msra.mxu0 0.0
        %518 = vmatprep.subr.mxu0 0.0
        %519 = vmatpush2.msra.mxu0 0.0
        %520 = vmatprep.subr.mxu0 0.0
        %521 = vmatpush2.msra.mxu0 0.0
        %522 = vmatprep.subr.mxu0 0.0
        %523 = vmatpush2.msra.mxu0 0.0
        %524 = vmatprep.subr.mxu0 0.0
        %525 = vmatpush2.msra.mxu0 0.0
        %526 = vmatprep.mubr.f32.mxu0 0.0
        %527 = vmatmul.mubr.f32.gmra.mxu0 %v460
        %v528 = vpop.f32.mrf.mxu0
        %v529 = vadd.f32 0.0, %v528
        %v530 = vpop.f32.mrf.mxu0
        %531 = vdwg.mxu0
        %vm532 = vcmask 64512
        %v534 = vsel %vm532, %v453, 0
        %536 = vmatprep.subr.mxu0 0.0
        %537 = vmatpush1.msra.mxu0 0.0
        %538 = vmatprep.subr.mxu0 0.0
        %539 = vmatpush1.msra.mxu0 0.0
        %540 = vmatprep.subr.mxu0 0.0
        %541 = vmatpush1.msra.mxu0 0.0
        %542 = vmatprep.subr.mxu0 0.0
        %543 = vmatpush1.msra.mxu0 0.0
        %544 = vmatprep.subr.mxu0 0.0
        %545 = vmatpush1.msra.mxu0 0.0
        %546 = vmatprep.subr.mxu0 0.0
        %547 = vmatpush1.msra.mxu0 0.0
        %548 = vmatprep.subr.mxu0 0.0
        %549 = vmatpush1.msra.mxu0 0.0
        %550 = vmatprep.subr.mxu0 0.0
        %551 = vmatpush1.msra.mxu0 0.0
        %552 = vmatprep.subr.mxu0 0.0
        %553 = vmatpush1.msra.mxu0 0.0
        %554 = vmatprep.subr.mxu0 0.0
        %555 = vmatpush1.msra.mxu0 0.0
        %556 = vmatprep.subr.mxu0 0.0
        %557 = vmatpush1.msra.mxu0 0.0
        %558 = vmatprep.subr.mxu0 0.0
        %559 = vmatpush1.msra.mxu0 0.0
        %560 = vmatprep.subr.mxu0 0.0
        %561 = vmatpush1.msra.mxu0 0.0
        %562 = vmatprep.subr.mxu0 0.0
        %563 = vmatpush1.msra.mxu0 0.0
        %564 = vmatprep.subr.mxu0 0.0
        %565 = vmatpush1.msra.mxu0 0.0
        %566 = vmatprep.subr.mxu0 0.0
        %567 = vmatpush1.msra.mxu0 %v454
        %568 = vmatprep.subr.mxu0 0.0
        %569 = vmatpush2.msra.mxu0 0.0
        %570 = vmatprep.subr.mxu0 0.0
        %571 = vmatpush2.msra.mxu0 0.0
        %572 = vmatprep.subr.mxu0 0.0
        %573 = vmatpush2.msra.mxu0 0.0
        %574 = vmatprep.subr.mxu0 0.0
        %575 = vmatpush2.msra.mxu0 0.0
        %576 = vmatprep.subr.mxu0 0.0
        %577 = vmatpush2.msra.mxu0 0.0
        %578 = vmatprep.subr.mxu0 0.0
        %579 = vmatpush2.msra.mxu0 0.0
        %580 = vmatprep.subr.mxu0 0.0
        %581 = vmatpush2.msra.mxu0 0.0
        %582 = vmatprep.subr.mxu0 0.0
        %583 = vmatpush2.msra.mxu0 0.0
        %584 = vmatprep.subr.mxu0 0.0
        %585 = vmatpush2.msra.mxu0 0.0
        %586 = vmatprep.subr.mxu0 0.0
        %587 = vmatpush2.msra.mxu0 0.0
        %588 = vmatprep.subr.mxu0 0.0
        %589 = vmatpush2.msra.mxu0 0.0
        %590 = vmatprep.subr.mxu0 0.0
        %591 = vmatpush2.msra.mxu0 0.0
        %592 = vmatprep.subr.mxu0 0.0
        %593 = vmatpush2.msra.mxu0 0.0
        %594 = vmatprep.subr.mxu0 0.0
        %595 = vmatpush2.msra.mxu0 0.0
        %596 = vmatprep.subr.mxu0 0.0
        %597 = vmatpush2.msra.mxu0 0.0
        %598 = vmatprep.subr.mxu0 0.0
        %599 = vmatpush2.msra.mxu0 0.0
        %600 = vmatprep.mubr.f32.mxu0 0.0
        %601 = vmatmul.mubr.f32.gmra.mxu0 %v534
        %v602 = vpop.f32.mrf.mxu0
        %v603 = vadd.f32 %v529, %v602
        %v604 = vpop.f32.mrf.mxu0
        %605 = vdwg.mxu0
        %v606 = vld [vmem:[#allocation10] sm:$0xff]
        %v607 = vld [vmem:[#allocation10 + $0x8] sm:$0xff]
        %v608 = vld [vmem:[#allocation10 + $0x10] sm:$0xff]
        %v609 = vld [vmem:[#allocation10 + $0x18] sm:$0xff]
        %vm610 = vcmask 261120
        %v612 = vsel %vm610, %v452, 0
        %614 = vmatprep.subr.mxu0 0.0
        %615 = vmatpush1.msra.mxu0 0.0
        %616 = vmatprep.subr.mxu0 0.0
        %617 = vmatpush1.msra.mxu0 0.0
        %618 = vmatprep.subr.mxu0 0.0
        %619 = vmatpush1.msra.mxu0 0.0
        %620 = vmatprep.subr.mxu0 0.0
        %621 = vmatpush1.msra.mxu0 0.0
        %622 = vmatprep.subr.mxu0 0.0
        %623 = vmatpush1.msra.mxu0 0.0
        %624 = vmatprep.subr.mxu0 0.0
        %625 = vmatpush1.msra.mxu0 0.0
        %626 = vmatprep.subr.mxu0 0.0
        %627 = vmatpush1.msra.mxu0 0.0
        %628 = vmatprep.subr.mxu0 0.0
        %629 = vmatpush1.msra.mxu0 0.0
        %630 = vmatprep.subr.mxu0 0.0
        %631 = vmatpush1.msra.mxu0 0.0
        %632 = vmatprep.subr.mxu0 0.0
        %633 = vmatpush1.msra.mxu0 0.0
        %634 = vmatprep.subr.mxu0 0.0
        %635 = vmatpush1.msra.mxu0 0.0
        %636 = vmatprep.subr.mxu0 0.0
        %637 = vmatpush1.msra.mxu0 0.0
        %638 = vmatprep.subr.mxu0 0.0
        %639 = vmatpush1.msra.mxu0 %v609
        %640 = vmatprep.subr.mxu0 0.0
        %641 = vmatpush1.msra.mxu0 %v608
        %642 = vmatprep.subr.mxu0 0.0
        %643 = vmatpush1.msra.mxu0 %v607
        %644 = vmatprep.subr.mxu0 0.0
        %645 = vmatpush1.msra.mxu0 %v606
        %646 = vmatprep.subr.mxu0 0.0
        %647 = vmatpush2.msra.mxu0 0.0
        %648 = vmatprep.subr.mxu0 0.0
        %649 = vmatpush2.msra.mxu0 0.0
        %650 = vmatprep.subr.mxu0 0.0
        %651 = vmatpush2.msra.mxu0 0.0
        %652 = vmatprep.subr.mxu0 0.0
        %653 = vmatpush2.msra.mxu0 0.0
        %654 = vmatprep.subr.mxu0 0.0
        %655 = vmatpush2.msra.mxu0 0.0
        %656 = vmatprep.subr.mxu0 0.0
        %657 = vmatpush2.msra.mxu0 0.0
        %658 = vmatprep.subr.mxu0 0.0
        %659 = vmatpush2.msra.mxu0 0.0
        %660 = vmatprep.subr.mxu0 0.0
        %661 = vmatpush2.msra.mxu0 0.0
        %662 = vmatprep.subr.mxu0 0.0
        %663 = vmatpush2.msra.mxu0 0.0
        %664 = vmatprep.subr.mxu0 0.0
        %665 = vmatpush2.msra.mxu0 0.0
        %666 = vmatprep.subr.mxu0 0.0
        %667 = vmatpush2.msra.mxu0 0.0
        %668 = vmatprep.subr.mxu0 0.0
        %669 = vmatpush2.msra.mxu0 0.0
        %670 = vmatprep.subr.mxu0 0.0
        %671 = vmatpush2.msra.mxu0 0.0
        %672 = vmatprep.subr.mxu0 0.0
        %673 = vmatpush2.msra.mxu0 0.0
        %674 = vmatprep.subr.mxu0 0.0
        %675 = vmatpush2.msra.mxu0 0.0
        %676 = vmatprep.subr.mxu0 0.0
        %677 = vmatpush2.msra.mxu0 0.0
        %678 = vmatprep.mubr.f32.mxu0 0.0
        %679 = vmatmul.mubr.f32.gmra.mxu0 %v612
        %v680 = vpop.f32.mrf.mxu0
        %v681 = vadd.f32 0.0, %v680
        %v682 = vpop.f32.mrf.mxu0
        %683 = vdwg.mxu0
        %v684 = vadd.f32 %v603, %v681
        %v685 = vld [vmem:[%s6] sm:$0x1]
        %v687 = vlaneseq
        %v688 = vshrl.u32 %v687, 7
        %v689 = vsub.s32 0, %v688
        %v690 = vrot.slane %v685, %v689
        %v692 = vadd.f32 %v684, %v690
        %v693 = vld [vmem:[%s7] sm:$0xff]
        %v694 = vld [vmem:[%s7 + $0x8] sm:$0xff]
        %v695 = vld [vmem:[%s7 + $0x10] sm:$0xff]
        %v696 = vld [vmem:[%s7 + $0x18] sm:$0xff]
        %v697 = vld [vmem:[%s7 + $0x20] sm:$0xff]
        %v698 = vld [vmem:[%s7 + $0x28] sm:$0xff]
        %v699 = vld [vmem:[%s8] sm:$0x1]
        %v701 = vlaneseq
        %v702 = vshrl.u32 %v701, 7
        %v703 = vsub.s32 0, %v702
        %v704 = vrot.slane %v699, %v703
        %vm706 = vcmask 392192
        %v708 = vsel %vm706, %v692, 0
        %710 = vmatprep.subr.mxu0 0.0
        %711 = vmatpush1.msra.mxu0 0.0
        %712 = vmatprep.subr.mxu0 0.0
        %713 = vmatpush1.msra.mxu0 0.0
        %714 = vmatprep.subr.mxu0 0.0
        %715 = vmatpush1.msra.mxu0 0.0
        %716 = vmatprep.subr.mxu0 0.0
        %717 = vmatpush1.msra.mxu0 0.0
        %718 = vmatprep.subr.mxu0 0.0
        %719 = vmatpush1.msra.mxu0 0.0
        %720 = vmatprep.subr.mxu0 0.0
        %721 = vmatpush1.msra.mxu0 0.0
        %722 = vmatprep.subr.mxu0 0.0
        %723 = vmatpush1.msra.mxu0 0.0
        %724 = vmatprep.subr.mxu0 0.0
        %725 = vmatpush1.msra.mxu0 0.0
        %726 = vmatprep.subr.mxu0 0.0
        %727 = vmatpush1.msra.mxu0 0.0
        %728 = vmatprep.subr.mxu0 0.0
        %729 = vmatpush1.msra.mxu0 0.0
        %730 = vmatprep.subr.mxu0 0.0
        %731 = vmatpush1.msra.mxu0 %v698
        %732 = vmatprep.subr.mxu0 0.0
        %733 = vmatpush1.msra.mxu0 %v697
        %734 = vmatprep.subr.mxu0 0.0
        %735 = vmatpush1.msra.mxu0 %v696
        %736 = vmatprep.subr.mxu0 0.0
        %737 = vmatpush1.msra.mxu0 %v695
        %738 = vmatprep.subr.mxu0 0.0
        %739 = vmatpush1.msra.mxu0 %v694
        %740 = vmatprep.subr.mxu0 0.0
        %741 = vmatpush1.msra.mxu0 %v693
        %742 = vmatprep.subr.mxu0 0.0
        %743 = vmatpush2.msra.mxu0 0.0
        %744 = vmatprep.subr.mxu0 0.0
        %745 = vmatpush2.msra.mxu0 0.0
        %746 = vmatprep.subr.mxu0 0.0
        %747 = vmatpush2.msra.mxu0 0.0
        %748 = vmatprep.subr.mxu0 0.0
        %749 = vmatpush2.msra.mxu0 0.0
        %750 = vmatprep.subr.mxu0 0.0
        %751 = vmatpush2.msra.mxu0 0.0
        %752 = vmatprep.subr.mxu0 0.0
        %753 = vmatpush2.msra.mxu0 0.0
        %754 = vmatprep.subr.mxu0 0.0
        %755 = vmatpush2.msra.mxu0 0.0
        %756 = vmatprep.subr.mxu0 0.0
        %757 = vmatpush2.msra.mxu0 0.0
        %758 = vmatprep.subr.mxu0 0.0
        %759 = vmatpush2.msra.mxu0 0.0
        %760 = vmatprep.subr.mxu0 0.0
        %761 = vmatpush2.msra.mxu0 0.0
        %762 = vmatprep.subr.mxu0 0.0
        %763 = vmatpush2.msra.mxu0 0.0
        %764 = vmatprep.subr.mxu0 0.0
        %765 = vmatpush2.msra.mxu0 0.0
        %766 = vmatprep.subr.mxu0 0.0
        %767 = vmatpush2.msra.mxu0 0.0
        %768 = vmatprep.subr.mxu0 0.0
        %769 = vmatpush2.msra.mxu0 0.0
        %770 = vmatprep.subr.mxu0 0.0
        %771 = vmatpush2.msra.mxu0 0.0
        %772 = vmatprep.subr.mxu0 0.0
        %773 = vmatpush2.msra.mxu0 0.0
        %774 = vmatprep.mubr.f32.mxu0 0.0
        %775 = vmatmul.mubr.f32.gmra.mxu0 %v708
        %v776 = vpop.f32.mrf.mxu0
        %v777 = vadd.f32 %v704, %v776
        %v778 = vpop.f32.mrf.mxu0
        %779 = vdwg.mxu0
        %v780 = vsel %vm458, %v777, -inf
        %781 = vmax.xlane.f32.xlu0 %v780
        %v782 = vpop.xlane.xlu0 %781
        %v783 = vsub.f32 %v777, %v782
        %v784 = vmul.f32 %v783, 1.442695
        %v785 = vpow.pop %v784
        %v786 = vsel %vm458, %v785, 0.0
        %787 = vadd.xlane.f32.xlu0 %v786
        %v788 = vpop.xlane.xlu0 %787
        %v789 = vlog2.pop %v788
        %v790 = vmul.f32 %v789, 0.6931472
        %v791 = vsub.f32 %v783, %v790
        %792 = vst.msk [vmem:[%s438] sm:$0xff] %vm458, %v791
        %793 = vst.msk [vmem:[#allocation12] sm:$0xff] %vm610, %v692
        %s794 = sand.u32 %s238, 1
        %s795 = scalar_lea.sflag [#allocation4], %s794
        %s796 = sand.u32 %s238, 1
        %s797 = smul.addr %s796, 8
        %s798 = scalar_lea.vmem [#allocation11], %s797
        // Predicated region
        $region81: #{tpu_custom_call.1} parent=55 // pred_check
          %p799 = pneg %p248
        $region82: #{tpu_custom_call.1} parent=55 // pred_check_branch
          %801 = sbr.rel (%p799) target = $region84
        $region83: #{tpu_custom_call.1} parent=55 // pred_region
          %s803 = ssub.s32 128, 128
          %804 = vsyncadd %s795, %s803
          %s805 = smul.addr %s31, 128
          %s806 = scalar_lea.hbm %s9, %s805
          %s808 = sshll.u32 %s798, 4
          %s809 = int_to_ptr.vmem [resolvable:$true] %s808
          %811 = dma.vmem_to_hbm [thread:$0]  %s809, 128, %s806, %s795
        $region84: #{tpu_custom_call.1} parent=55 // pred_fallthru
          _
        // Predicated region
        $region85: #{tpu_custom_call.1} parent=55 // pred_check
          %p812 = pneg %p269
        $region86: #{tpu_custom_call.1} parent=55 // pred_check_branch
          %814 = sbr.rel (%p812) target = $region88
        $region87: #{tpu_custom_call.1} parent=55 // pred_region
          %s816 = ssub.s32 128, 128
          %817 = vsyncadd [#allocation13], %s816
          %s819 = sshll.u32 [#allocation12], 4
          %s820 = int_to_ptr.vmem [resolvable:$true] %s819
          %822 = dma.vmem_to_hbm [thread:$0]  %s820, 128, %s10, [#allocation13]
        $region88: #{tpu_custom_call.1} parent=55 // pred_fallthru
          _
        // Predicated region
        $region89: #{tpu_custom_call.1} parent=55 // pred_check
          %p823 = pneg %p269
        $region90: #{tpu_custom_call.1} parent=55 // pred_check_branch
          %825 = sbr.rel (%p823) target = $region92
        $region91: #{tpu_custom_call.1} parent=55 // pred_region
          %826 = dma.done [#allocation13], 128
        $region92: #{tpu_custom_call.1} parent=55 // pred_fallthru
          _
      $region56: #{tpu_custom_call.1} parent=5 // pred_fallthru
        _
      %p827 = scmp.le.s32.totalorder 2, %s26
      // Predicated region
      $region93: #{tpu_custom_call.1} parent=5 // pred_check
        %p828 = pneg %p827
      $region94: #{tpu_custom_call.1} parent=5 // pred_check_branch
        %830 = sbr.rel (%p828) target = $region96
      $region95: #{tpu_custom_call.1} parent=5 // pred_region
        %s831 = ssub.s32 %s26, 2
        // Predicated region
        $region97: #{tpu_custom_call.1} parent=95 // pred_check
          %p832 = pneg %p254
        $region98: #{tpu_custom_call.1} parent=95 // pred_check_branch
          %834 = sbr.rel (%p832) target = $region100
        $region99: #{tpu_custom_call.1} parent=95 // pred_region
          %s835 = sand.u32 %s239, 1
          %s836 = scalar_lea.sflag [#allocation4], %s835
          %s837 = sand.u32 %s239, 1
          %s838 = smul.addr %s837, 8
          %s839 = scalar_lea.vmem [#allocation11], %s838
          %840 = dma.done %s836, 128
        $region100: #{tpu_custom_call.1} parent=95 // pred_fallthru
          _
      $region96: #{tpu_custom_call.1} parent=5 // pred_fallthru
        _
    $region6: #{tpu_custom_call.1} parent=1 // loop_footer
      %s30 = sadd.s32 1, %s26
    $region7: #{tpu_custom_call.1} parent=1 // loop_footer_branch
      %25 = sbr.rel target = $region3
    $region8: #{tpu_custom_call.1} parent=1 // loop_exit
      _
    %841 = vsyncpa [#allocation3], 1
    %s842 = scalar_lea.sflag [#allocation3], 1
    %843 = vsyncpa %s842, 1
    %844 = vsyncpa [#allocation6], 1
    %845 = vsyncpa [#allocation9], 1
    %846 = vsyncpa [#allocation4], 1
    %s847 = scalar_lea.sflag [#allocation4], 1
    %848 = vsyncpa %s847, 1
    %849 = vsyncpa [#allocation13], 1

</llo_original>
